<compile_context>
chip_gen: v7x
topology: tpu7x:2x2x1
jax: 0.10.0
libtpu: 0.0.40
codegen_flags: <defaults>
</compile_context>

<pallas_src>
import functools

import jax
import jax.numpy as jnp
from jax.experimental import pallas as pl
from jax.experimental.pallas import tpu as pltpu


def _round_up(n, m):
    return ((n + m - 1) // m) * m


def _bf16_epilogue_supported():
    # v6e / v7x have a bf16-capable VALU; v5e and older do not.
    kind = jax.devices()[0].device_kind.lower()
    return any(tag in kind for tag in ("v6", "v7", "7x"))


def _make_mlp_kernel(bf16_epilogue):
    if bf16_epilogue:
        def _act(acc_f32, b_ref):
            # Downcast the MXU accumulator once; bias-add + ReLU in bf16
            # (biases for layers 1-3 are pre-cast to bf16 in the wrapper).
            return jnp.maximum(acc_f32.astype(jnp.bfloat16) + b_ref[...], 0.0)
    else:
        def _act(acc_f32, b_ref):
            # f32 epilogue (v5e VPU has no bf16); cast to bf16 for next MXU pass.
            return jnp.maximum(acc_f32 + b_ref[...], 0.0).astype(jnp.bfloat16)

    def kernel(x_ref,
               w1_ref, b1_ref,
               w2_ref, b2_ref,
               w3_ref, b3_ref,
               w4_ref, b4_ref,
               o_ref):
        h = x_ref[...].astype(jnp.bfloat16)
        h = _act(jnp.dot(h, w1_ref[...], preferred_element_type=jnp.float32), b1_ref)
        h = _act(jnp.dot(h, w2_ref[...], preferred_element_type=jnp.float32), b2_ref)
        h = _act(jnp.dot(h, w3_ref[...], preferred_element_type=jnp.float32), b3_ref)
        # Final layer: f32 bias-add, lane-dense (128-wide) unmasked f32 store.
        o_ref[...] = (jnp.dot(h, w4_ref[...], preferred_element_type=jnp.float32)
                      + b4_ref[...])

    return kernel


@functools.partial(jax.jit, static_argnames=("num_actions",))
def deep_q_net_forward(x, params, *, num_actions):
    """x: (B, num_states) f32. params: w1..w4 bf16 (in,out), b1..b4 f32 (1,out);
    w4/b4 zero-padded to a lane-dense width (>=128)."""
    batch, num_states = x.shape
    a_pad = params["w4"].shape[1]          # lane-padded action width (>=128)

    bf16_ep = _bf16_epilogue_supported()

    # Pad batch only to a sublane multiple (<=7 extra rows); the grid itself is
    # cdiv-ragged instead of padding up to a full tile multiple.
    b8 = _round_up(batch, 8)
    if b8 != batch:
        x = jnp.pad(x, ((0, b8 - batch), (0, 0)))

    # Batch tile: large enough to amortize the ~0.35us per-grid-step overhead,
    # capped at 1024, and split into >=2 blocks when possible so v7x's two
    # TensorCores both get work (no-op on single-TC v5e/v6e).
    tb = max(8, min(1024, _round_up(max(1, -(-b8 // 2)), 8), b8))
    n_blocks = -(-b8 // tb)

    if bf16_ep:
        b1, b2, b3 = (params[k].astype(jnp.bfloat16) for k in ("b1", "b2", "b3"))
    else:
        b1, b2, b3 = params["b1"], params["b2"], params["b3"]

    def _resident(arr):
        # Full-array block + constant index map: DMA'd once, VMEM-resident
        # across all grid steps (no per-step re-DMA of weights/biases).
        return pl.BlockSpec(arr.shape, lambda i: (0, 0))

    in_specs = [
        pl.BlockSpec((tb, num_states), lambda i: (i, 0)),   # x: tiled on batch
        _resident(params["w1"]), _resident(b1),
        _resident(params["w2"]), _resident(b2),
        _resident(params["w3"]), _resident(b3),
        _resident(params["w4"]), _resident(params["b4"]),
    ]
    out_spec = pl.BlockSpec((tb, a_pad), lambda i: (i, 0))

    out = pl.pallas_call(
        _make_mlp_kernel(bf16_ep),
        out_shape=jax.ShapeDtypeStruct((b8, a_pad), jnp.float32),
        grid=(n_blocks,),
        in_specs=in_specs,
        out_specs=out_spec,
        compiler_params=pltpu.CompilerParams(
            dimension_semantics=("parallel",)),   # megacore sharding on v7x
    )(x,
      params["w1"], b1,
      params["w2"], b2,
      params["w3"], b3,
      params["w4"], params["b4"])

    return out[:batch, :num_actions]


def init_params(key, num_states, num_actions):
    """PyTorch nn.Linear-style init U(-1/sqrt(fan_in), +1/sqrt(fan_in)).

    Weights are stored transposed (in_features, out_features) in bf16 for the
    MXU; biases are f32, shaped (1, out). The final layer is zero-padded to
    round_up(num_actions, 128) output lanes so the kernel's store is
    lane-dense; the wrapper slices the real actions back out.
    """
    a_pad = _round_up(max(num_actions, 1), 128)
    dims = [(num_states, 128), (128, 256), (256, 64), (64, num_actions)]
    params = {}
    for i, (fan_in, fan_out) in enumerate(dims, start=1):
        key, kw, kb = jax.random.split(key, 3)
        bound = float(fan_in) ** -0.5
        w = jax.random.uniform(kw, (fan_in, fan_out), jnp.float32, -bound, bound)
        b = jax.random.uniform(kb, (1, fan_out), jnp.float32, -bound, bound)
        if i == 4:
            w = jnp.pad(w, ((0, 0), (0, a_pad - fan_out)))
            b = jnp.pad(b, ((0, 0), (0, a_pad - fan_out)))
        params[f"w{i}"] = w.astype(jnp.bfloat16)
        params[f"b{i}"] = b
    return params


def reference_forward(x, params, num_actions, bf16_epilogue):
    """Pure-JAX reference mirroring the kernel's numerics (bf16 MXU inputs,
    f32 accumulation, and the same bias/ReLU epilogue precision)."""
    def act(acc, b):
        if bf16_epilogue:
            return jnp.maximum(acc.astype(jnp.bfloat16) + b.astype(jnp.bfloat16), 0.0)
        return jnp.maximum(acc + b, 0.0).astype(jnp.bfloat16)

    h = x.astype(jnp.bfloat16)
    h = act(jnp.dot(h, params["w1"], preferred_element_type=jnp.float32), params["b1"])
    h = act(jnp.dot(h, params["w2"], preferred_element_type=jnp.float32), params["b2"])
    h = act(jnp.dot(h, params["w3"], preferred_element_type=jnp.float32), params["b3"])
    out = jnp.dot(h, params["w4"], preferred_element_type=jnp.float32) + params["b4"]
    return out[:, :num_actions]


if __name__ == "__main__":
    num_states = 8     # small observation vector
    num_actions = 4

    key = jax.random.PRNGKey(0)
    key, k_small, k_big, k_ragged = jax.random.split(key, 4)
    params = init_params(key, num_states, num_actions)
    bf16_ep = _bf16_epilogue_supported()

    def check(x):
        out = jax.block_until_ready(
            deep_q_net_forward(x, params, num_actions=num_actions))
        ref = reference_forward(x, params, num_actions, bf16_ep)
        assert out.shape == (x.shape[0], num_actions)
        err = jnp.max(jnp.abs(out - ref))
        assert jnp.allclose(out, ref, atol=2e-3, rtol=2e-3), (
            f"mismatch: max abs diff = {err}")

    # Small batch: exercises pad-to-8 path (2 -> 8 rows, single block).
    check(jax.random.normal(k_small, (2, num_states), jnp.float32))
    # Larger batch: 2 even blocks of 192 (megacore-friendly split).
    check(jax.random.normal(k_big, (384, num_states), jnp.float32))
    # Non-multiple batch: exercises the ragged last block (no pad-to-tile).
    check(jax.random.normal(k_ragged, (130, num_states), jnp.float32))

    print("KERNEL_OK")
</pallas_src>

<mosaic_0001>
module attributes {stable_mosaic.version = 11 : i64} {
  func.func @kernel(%arg0: i32, %arg1: memref<8x8xf32, #tpu.memory_space<vmem>>, %arg2: memref<8x128xbf16, #tpu.memory_space<vmem>>, %arg3: memref<1x128xf32, #tpu.memory_space<vmem>>, %arg4: memref<128x256xbf16, #tpu.memory_space<vmem>>, %arg5: memref<1x256xf32, #tpu.memory_space<vmem>>, %arg6: memref<256x64xbf16, #tpu.memory_space<vmem>>, %arg7: memref<1x64xf32, #tpu.memory_space<vmem>>, %arg8: memref<64x128xbf16, #tpu.memory_space<vmem>>, %arg9: memref<1x128xf32, #tpu.memory_space<vmem>>, %arg10: memref<8x128xf32, #tpu.memory_space<vmem>>) attributes {dimension_semantics = [#tpu.dimension_semantics<parallel>], iteration_bounds = array<i64: 1>, scalar_prefetch = 0 : i64, scratch_operands = 0 : i64, tpu.core_type = #tpu.core_type<tc>, window_params = [{transform_indices = @transform_0, window_bounds = array<i64: 8, 8>}, {pipeline_mode = #tpu.pipeline_mode<synchronous>, transform_indices = @transform_1, window_bounds = array<i64: 8, 128>}, {pipeline_mode = #tpu.pipeline_mode<synchronous>, transform_indices = @transform_2, window_bounds = array<i64: 1, 128>}, {pipeline_mode = #tpu.pipeline_mode<synchronous>, transform_indices = @transform_3, window_bounds = array<i64: 128, 256>}, {pipeline_mode = #tpu.pipeline_mode<synchronous>, transform_indices = @transform_4, window_bounds = array<i64: 1, 256>}, {pipeline_mode = #tpu.pipeline_mode<synchronous>, transform_indices = @transform_5, window_bounds = array<i64: 256, 64>}, {pipeline_mode = #tpu.pipeline_mode<synchronous>, transform_indices = @transform_6, window_bounds = array<i64: 1, 64>}, {pipeline_mode = #tpu.pipeline_mode<synchronous>, transform_indices = @transform_7, window_bounds = array<i64: 64, 128>}, {pipeline_mode = #tpu.pipeline_mode<synchronous>, transform_indices = @transform_8, window_bounds = array<i64: 1, 128>}, {transform_indices = @transform_9, window_bounds = array<i64: 8, 128>}]} {
    %c0 = arith.constant 0 : index
    %c0_0 = arith.constant 0 : index
    %0 = vector.load %arg1[%c0, %c0_0] : memref<8x8xf32, #tpu.memory_space<vmem>>, vector<8x8xf32>
    %1 = arith.truncf %0 : vector<8x8xf32> to vector<8x8xbf16>
    %c0_1 = arith.constant 0 : index
    %c0_2 = arith.constant 0 : index
    %2 = vector.load %arg2[%c0_1, %c0_2] : memref<8x128xbf16, #tpu.memory_space<vmem>>, vector<8x128xbf16>
    %cst = arith.constant dense<0.000000e+00> : vector<8x128xf32>
    %3 = tpu.matmul %1, %2, %cst {dimension_numbers = #tpu.dot_dimension_numbers<[1], [0], [0], [1], [0, 0, 1, 1], [], []>} : vector<8x8xbf16>, vector<8x128xbf16>, vector<8x128xf32> -> vector<8x128xf32>
    %c0_3 = arith.constant 0 : index
    %c0_4 = arith.constant 0 : index
    %4 = vector.load %arg3[%c0_3, %c0_4] : memref<1x128xf32, #tpu.memory_space<vmem>>, vector<1x128xf32>
    %5 = vector.broadcast %4 : vector<1x128xf32> to vector<8x128xf32>
    %6 = arith.addf %3, %5 : vector<8x128xf32>
    %cst_5 = arith.constant 0.000000e+00 : f32
    %7 = vector.broadcast %cst_5 : f32 to vector<8x128xf32>
    %8 = arith.maximumf %6, %7 : vector<8x128xf32>
    %9 = arith.truncf %8 : vector<8x128xf32> to vector<8x128xbf16>
    %c0_6 = arith.constant 0 : index
    %c0_7 = arith.constant 0 : index
    %10 = vector.load %arg4[%c0_6, %c0_7] : memref<128x256xbf16, #tpu.memory_space<vmem>>, vector<128x256xbf16>
    %cst_8 = arith.constant dense<0.000000e+00> : vector<8x256xf32>
    %11 = tpu.matmul %9, %10, %cst_8 {dimension_numbers = #tpu.dot_dimension_numbers<[1], [0], [0], [1], [0, 0, 1, 1], [], []>} : vector<8x128xbf16>, vector<128x256xbf16>, vector<8x256xf32> -> vector<8x256xf32>
    %c0_9 = arith.constant 0 : index
    %c0_10 = arith.constant 0 : index
    %12 = vector.load %arg5[%c0_9, %c0_10] : memref<1x256xf32, #tpu.memory_space<vmem>>, vector<1x256xf32>
    %13 = vector.broadcast %12 : vector<1x256xf32> to vector<8x256xf32>
    %14 = arith.addf %11, %13 : vector<8x256xf32>
    %cst_11 = arith.constant 0.000000e+00 : f32
    %15 = vector.broadcast %cst_11 : f32 to vector<8x256xf32>
    %16 = arith.maximumf %14, %15 : vector<8x256xf32>
    %17 = arith.truncf %16 : vector<8x256xf32> to vector<8x256xbf16>
    %c0_12 = arith.constant 0 : index
    %c0_13 = arith.constant 0 : index
    %18 = vector.load %arg6[%c0_12, %c0_13] : memref<256x64xbf16, #tpu.memory_space<vmem>>, vector<256x64xbf16>
    %cst_14 = arith.constant dense<0.000000e+00> : vector<8x64xf32>
    %19 = tpu.matmul %17, %18, %cst_14 {dimension_numbers = #tpu.dot_dimension_numbers<[1], [0], [0], [1], [0, 0, 1, 1], [], []>} : vector<8x256xbf16>, vector<256x64xbf16>, vector<8x64xf32> -> vector<8x64xf32>
    %c0_15 = arith.constant 0 : index
    %c0_16 = arith.constant 0 : index
    %20 = vector.load %arg7[%c0_15, %c0_16] : memref<1x64xf32, #tpu.memory_space<vmem>>, vector<1x64xf32>
    %21 = vector.broadcast %20 : vector<1x64xf32> to vector<8x64xf32>
    %22 = arith.addf %19, %21 : vector<8x64xf32>
    %cst_17 = arith.constant 0.000000e+00 : f32
    %23 = vector.broadcast %cst_17 : f32 to vector<8x64xf32>
    %24 = arith.maximumf %22, %23 : vector<8x64xf32>
    %25 = arith.truncf %24 : vector<8x64xf32> to vector<8x64xbf16>
    %c0_18 = arith.constant 0 : index
    %c0_19 = arith.constant 0 : index
    %26 = vector.load %arg8[%c0_18, %c0_19] : memref<64x128xbf16, #tpu.memory_space<vmem>>, vector<64x128xbf16>
    %cst_20 = arith.constant dense<0.000000e+00> : vector<8x128xf32>
    %27 = tpu.matmul %25, %26, %cst_20 {dimension_numbers = #tpu.dot_dimension_numbers<[1], [0], [0], [1], [0, 0, 1, 1], [], []>} : vector<8x64xbf16>, vector<64x128xbf16>, vector<8x128xf32> -> vector<8x128xf32>
    %c0_21 = arith.constant 0 : index
    %c0_22 = arith.constant 0 : index
    %28 = vector.load %arg9[%c0_21, %c0_22] : memref<1x128xf32, #tpu.memory_space<vmem>>, vector<1x128xf32>
    %29 = vector.broadcast %28 : vector<1x128xf32> to vector<8x128xf32>
    %30 = arith.addf %27, %29 : vector<8x128xf32>
    %c0_23 = arith.constant 0 : index
    %c0_24 = arith.constant 0 : index
    %31 = vector.load %arg10[%c0_23, %c0_24] : memref<8x128xf32, #tpu.memory_space<vmem>>, vector<8x128xf32>
    tpu.vector_store %arg10[%c0_23, %c0_24], %30 {strides = array<i32>} : memref<8x128xf32, #tpu.memory_space<vmem>>, vector<8x128xf32>,
    return
  }
  func.func @transform_0(%arg0: i32) -> (i32, i32) {
    %c0_i32 = arith.constant 0 : i32
    %c0_i32_0 = arith.constant 0 : i32
    return %arg0, %c0_i32 : i32, i32
  }
  func.func @transform_1(%arg0: i32) -> (i32, i32) {
    %c0_i32 = arith.constant 0 : i32
    %c0_i32_0 = arith.constant 0 : i32
    %c0_i32_1 = arith.constant 0 : i32
    return %c0_i32, %c0_i32_0 : i32, i32
  }
  func.func @transform_2(%arg0: i32) -> (i32, i32) {
    %c0_i32 = arith.constant 0 : i32
    %c0_i32_0 = arith.constant 0 : i32
    %c0_i32_1 = arith.constant 0 : i32
    return %c0_i32, %c0_i32_0 : i32, i32
  }
  func.func @transform_3(%arg0: i32) -> (i32, i32) {
    %c0_i32 = arith.constant 0 : i32
    %c0_i32_0 = arith.constant 0 : i32
    %c0_i32_1 = arith.constant 0 : i32
    return %c0_i32, %c0_i32_0 : i32, i32
  }
  func.func @transform_4(%arg0: i32) -> (i32, i32) {
    %c0_i32 = arith.constant 0 : i32
    %c0_i32_0 = arith.constant 0 : i32
    %c0_i32_1 = arith.constant 0 : i32
    return %c0_i32, %c0_i32_0 : i32, i32
  }
  func.func @transform_5(%arg0: i32) -> (i32, i32) {
    %c0_i32 = arith.constant 0 : i32
    %c0_i32_0 = arith.constant 0 : i32
    %c0_i32_1 = arith.constant 0 : i32
    return %c0_i32, %c0_i32_0 : i32, i32
  }
  func.func @transform_6(%arg0: i32) -> (i32, i32) {
    %c0_i32 = arith.constant 0 : i32
    %c0_i32_0 = arith.constant 0 : i32
    %c0_i32_1 = arith.constant 0 : i32
    return %c0_i32, %c0_i32_0 : i32, i32
  }
  func.func @transform_7(%arg0: i32) -> (i32, i32) {
    %c0_i32 = arith.constant 0 : i32
    %c0_i32_0 = arith.constant 0 : i32
    %c0_i32_1 = arith.constant 0 : i32
    return %c0_i32, %c0_i32_0 : i32, i32
  }
  func.func @transform_8(%arg0: i32) -> (i32, i32) {
    %c0_i32 = arith.constant 0 : i32
    %c0_i32_0 = arith.constant 0 : i32
    %c0_i32_1 = arith.constant 0 : i32
    return %c0_i32, %c0_i32_0 : i32, i32
  }
  func.func @transform_9(%arg0: i32) -> (i32, i32) {
    %c0_i32 = arith.constant 0 : i32
    %c0_i32_0 = arith.constant 0 : i32
    return %arg0, %c0_i32 : i32, i32
  }
}

</mosaic_0001>

<llo_original>
// kernel: deep_q_net_forward.1
$region0: #{deep_q_net_forward.1}
  #allocation0 [shape = 'u32[]', space=smem, size = 0x4, offset = 0x4, fixed_abs, tag = 'smem constant byte address 0x4 - core index']
  #allocation1 [shape = 'u32[144,128]{1,0:T(1,128)}', space=vmem, size = 0x12000, scoped, tag = 'internal scratch']
  %s0 = inlined_call_operand.vmem [shape: f32[8,8], index: 0, kind: input, shape index: {}]
  %s1 = inlined_call_operand.vmem [shape: bf16[8,128], index: 1, kind: input, shape index: {}]
  %s2 = inlined_call_operand.vmem [shape: f32[1,128], index: 2, kind: input, shape index: {}]
  %s3 = inlined_call_operand.vmem [shape: bf16[128,256], index: 3, kind: input, shape index: {}]
  %s4 = inlined_call_operand.vmem [shape: f32[1,256], index: 4, kind: input, shape index: {}]
  %s5 = inlined_call_operand.vmem [shape: bf16[256,64], index: 5, kind: input, shape index: {}]
  %s6 = inlined_call_operand.vmem [shape: f32[1,64], index: 6, kind: input, shape index: {}]
  %s7 = inlined_call_operand.vmem [shape: bf16[64,128], index: 7, kind: input, shape index: {}]
  %s8 = inlined_call_operand.vmem [shape: f32[1,128], index: 8, kind: input, shape index: {}]
  %s9 = inlined_call_operand.vmem [shape: f32[8,128], index: 9, kind: output, shape index: {}]
  %s10 = sld [smem:[#allocation0]]
  $region46: #{deep_q_net_forward.1} parent=0
    _
  %s12 = ssub.s32 1, %s10
  %s13 = scalar_select 0, %s12, %s10
  // Predicated region
  $region2: #{deep_q_net_forward.1} parent=0 // pred_check
    _
  $region3: #{deep_q_net_forward.1} parent=0 // pred_check_branch
    %15 = sbr.rel (0) target = $region5
  $region4: #{deep_q_net_forward.1} parent=0 // pred_region
    _
  $region5: #{deep_q_net_forward.1} parent=0 // pred_fallthru
    _
  // Predicated region
  $region6: #{deep_q_net_forward.1} parent=0 // pred_check
    _
  $region7: #{deep_q_net_forward.1} parent=0 // pred_check_branch
    %17 = sbr.rel (0) target = $region9
  $region8: #{deep_q_net_forward.1} parent=0 // pred_region
    _
  $region9: #{deep_q_net_forward.1} parent=0 // pred_fallthru
    _
  // Predicated region
  $region10: #{deep_q_net_forward.1} parent=0 // pred_check
    _
  $region11: #{deep_q_net_forward.1} parent=0 // pred_check_branch
    %19 = sbr.rel (0) target = $region13
  $region12: #{deep_q_net_forward.1} parent=0 // pred_region
    _
  $region13: #{deep_q_net_forward.1} parent=0 // pred_fallthru
    _
  // Predicated region
  $region14: #{deep_q_net_forward.1} parent=0 // pred_check
    _
  $region15: #{deep_q_net_forward.1} parent=0 // pred_check_branch
    %21 = sbr.rel (0) target = $region17
  $region16: #{deep_q_net_forward.1} parent=0 // pred_region
    _
  $region17: #{deep_q_net_forward.1} parent=0 // pred_fallthru
    _
  // Predicated region
  $region18: #{deep_q_net_forward.1} parent=0 // pred_check
    _
  $region19: #{deep_q_net_forward.1} parent=0 // pred_check_branch
    %23 = sbr.rel (0) target = $region21
  $region20: #{deep_q_net_forward.1} parent=0 // pred_region
    _
  $region21: #{deep_q_net_forward.1} parent=0 // pred_fallthru
    _
  // Predicated region
  $region22: #{deep_q_net_forward.1} parent=0 // pred_check
    _
  $region23: #{deep_q_net_forward.1} parent=0 // pred_check_branch
    %25 = sbr.rel (0) target = $region25
  $region24: #{deep_q_net_forward.1} parent=0 // pred_region
    _
  $region25: #{deep_q_net_forward.1} parent=0 // pred_fallthru
    _
  // Predicated region
  $region26: #{deep_q_net_forward.1} parent=0 // pred_check
    _
  $region27: #{deep_q_net_forward.1} parent=0 // pred_check_branch
    %27 = sbr.rel (0) target = $region29
  $region28: #{deep_q_net_forward.1} parent=0 // pred_region
    _
  $region29: #{deep_q_net_forward.1} parent=0 // pred_fallthru
    _
  // Predicated region
  $region30: #{deep_q_net_forward.1} parent=0 // pred_check
    _
  $region31: #{deep_q_net_forward.1} parent=0 // pred_check_branch
    %29 = sbr.rel (0) target = $region33
  $region32: #{deep_q_net_forward.1} parent=0 // pred_region
    _
  $region33: #{deep_q_net_forward.1} parent=0 // pred_fallthru
    _
  // Predicated region
  $region34: #{deep_q_net_forward.1} parent=0 // pred_check
    _
  $region35: #{deep_q_net_forward.1} parent=0 // pred_check_branch
    %31 = sbr.rel (0) target = $region37
  $region36: #{deep_q_net_forward.1} parent=0 // pred_region
    _
  $region37: #{deep_q_net_forward.1} parent=0 // pred_fallthru
    _
  %v33 = vld [vmem:[%s0] sm:$0xff]
  %v34 = vpack.c.bf16 %v33, %v33
  %v35 = vld [vmem:[%s1] sm:$0xf]
  %v36 = vld [vmem:[%s2] sm:$0x1]
  %v38 = vlaneseq
  %v39 = vshrl.u32 %v38, 7
  %v40 = vsub.s32 0, %v39
  %v41 = vrot.slane %v36, %v40
  %vm43 = vcmask 64512
  %v45 = vsel %vm43, %v34, 0
  %vm47 = vcmask 1043456
  %v49 = vsel %vm47, %v35, 0
  %51 = vmatprep.subr.bf16.mxu0 0
  %52 = vmatpush1.bf16.msra.mxu0 %v49
  %53 = vmatprep.subr.bf16.mxu0 0
  %54 = vmatpush1.bf16.msra.mxu0 0
  %55 = vmatprep.subr.bf16.mxu0 0
  %56 = vmatpush1.bf16.msra.mxu0 0
  %57 = vmatprep.subr.bf16.mxu0 0
  %58 = vmatpush1.bf16.msra.mxu0 0
  %59 = vmatprep.subr.bf16.mxu0 0
  %60 = vmatpush1.bf16.msra.mxu0 0
  %61 = vmatprep.subr.bf16.mxu0 0
  %62 = vmatpush1.bf16.msra.mxu0 0
  %63 = vmatprep.subr.bf16.mxu0 0
  %64 = vmatpush1.bf16.msra.mxu0 0
  %65 = vmatprep.subr.bf16.mxu0 0
  %66 = vmatpush1.bf16.msra.mxu0 0
  %67 = vmatprep.subr.bf16.mxu0 0
  %68 = vmatpush1.bf16.msra.mxu0 0
  %69 = vmatprep.subr.bf16.mxu0 0
  %70 = vmatpush1.bf16.msra.mxu0 0
  %71 = vmatprep.subr.bf16.mxu0 0
  %72 = vmatpush1.bf16.msra.mxu0 0
  %73 = vmatprep.subr.bf16.mxu0 0
  %74 = vmatpush1.bf16.msra.mxu0 0
  %75 = vmatprep.subr.bf16.mxu0 0
  %76 = vmatpush1.bf16.msra.mxu0 0
  %77 = vmatprep.subr.bf16.mxu0 0
  %78 = vmatpush1.bf16.msra.mxu0 0
  %79 = vmatprep.subr.bf16.mxu0 0
  %80 = vmatpush1.bf16.msra.mxu0 0
  %81 = vmatprep.subr.bf16.mxu0 0
  %82 = vmatpush1.bf16.msra.mxu0 0
  %83 = vmatprep.mubr.bf16.mxu0 0
  %84 = vmatmul.mubr.bf16.gmra.mrb[0].mxu0 %v45
  %v85 = vpop.f32.mrb[0].mxu0
  %v86 = vadd.f32 %v41, %v85
  %v87 = vpop.f32.mrb[0].mxu0
  %v88 = vpop.f32.mrb[0].mxu0
  %v89 = vpop.f32.mrb[0].mxu0
  %90 = vdwg.mxu0
  %v91 = vmax.f32 %v86, 0.0
  %v92 = vpack.c.bf16 %v91, %v91
  %v93 = vld [vmem:[%s3] sm:$0xff]
  %v94 = vld [vmem:[%s3 + $0x8] sm:$0xff]
  %v95 = vld [vmem:[%s3 + $0x10] sm:$0xff]
  %v96 = vld [vmem:[%s3 + $0x18] sm:$0xff]
  %v97 = vld [vmem:[%s3 + $0x20] sm:$0xff]
  %v98 = vld [vmem:[%s3 + $0x28] sm:$0xff]
  %v99 = vld [vmem:[%s3 + $0x30] sm:$0xff]
  %v100 = vld [vmem:[%s3 + $0x38] sm:$0xff]
  %v101 = vld [vmem:[%s3 + $0x40] sm:$0xff]
  %v102 = vld [vmem:[%s3 + $0x48] sm:$0xff]
  %v103 = vld [vmem:[%s3 + $0x50] sm:$0xff]
  %v104 = vld [vmem:[%s3 + $0x58] sm:$0xff]
  %v105 = vld [vmem:[%s3 + $0x60] sm:$0xff]
  %v106 = vld [vmem:[%s3 + $0x68] sm:$0xff]
  %v107 = vld [vmem:[%s3 + $0x70] sm:$0xff]
  %v108 = vld [vmem:[%s3 + $0x78] sm:$0xff]
  %v109 = vld [vmem:[%s4] sm:$0x3]
  %v111 = vlaneseq
  %v112 = vshrl.u32 %v111, 7
  %v113 = vsub.s32 0, %v112
  %v114 = vrot.slane %v109, %v113
  %v115 = vlaneseq
  %v116 = vshrl.u32 %v115, 7
  %v117 = vsub.s32 1, %v116
  %v118 = vrot.slane %v109, %v117
  %v137 = vunpack.c.l.b16 %v93
  %v138 = vunpack.c.h.b16 %v93
  %v139 = vunpack.c.l.b16 %v94
  %v140 = vunpack.c.h.b16 %v94
  %v141 = vunpack.c.l.b16 %v95
  %v142 = vunpack.c.h.b16 %v95
  %v143 = vunpack.c.l.b16 %v96
  %v144 = vunpack.c.h.b16 %v96
  %v145 = vunpack.c.l.b16 %v97
  %v146 = vunpack.c.h.b16 %v97
  %v147 = vunpack.c.l.b16 %v98
  %v148 = vunpack.c.h.b16 %v98
  %v149 = vunpack.c.l.b16 %v99
  %v150 = vunpack.c.h.b16 %v99
  %v151 = vunpack.c.l.b16 %v100
  %v152 = vunpack.c.h.b16 %v100
  %v153 = vunpack.c.l.b16 %v101
  %v154 = vunpack.c.h.b16 %v101
  %v155 = vunpack.c.l.b16 %v102
  %v156 = vunpack.c.h.b16 %v102
  %v157 = vunpack.c.l.b16 %v103
  %v158 = vunpack.c.h.b16 %v103
  %v159 = vunpack.c.l.b16 %v104
  %v160 = vunpack.c.h.b16 %v104
  %v161 = vunpack.c.l.b16 %v105
  %v162 = vunpack.c.h.b16 %v105
  %v163 = vunpack.c.l.b16 %v106
  %v164 = vunpack.c.h.b16 %v106
  %v165 = vunpack.c.l.b16 %v107
  %v166 = vunpack.c.h.b16 %v107
  %v167 = vunpack.c.l.b16 %v108
  %v168 = vunpack.c.h.b16 %v108
  %v169 = vpack.c.b16 %v139, %v137
  %v170 = vpack.c.b16 %v140, %v138
  %v171 = vpack.c.b16 %v143, %v141
  %v172 = vpack.c.b16 %v144, %v142
  %v173 = vpack.c.b16 %v147, %v145
  %v174 = vpack.c.b16 %v148, %v146
  %v175 = vpack.c.b16 %v151, %v149
  %v176 = vpack.c.b16 %v152, %v150
  %v177 = vpack.c.b16 %v155, %v153
  %v178 = vpack.c.b16 %v156, %v154
  %v179 = vpack.c.b16 %v159, %v157
  %v180 = vpack.c.b16 %v160, %v158
  %v181 = vpack.c.b16 %v163, %v161
  %v182 = vpack.c.b16 %v164, %v162
  %v183 = vpack.c.b16 %v167, %v165
  %v184 = vpack.c.b16 %v168, %v166
  %201 = vmatprep.subr.bf16.mxu0 %v170
  %202 = vmatpush1.bf16.msra.mxu0 %v169
  %203 = vmatprep.subr.bf16.mxu0 %v172
  %204 = vmatpush1.bf16.msra.mxu0 %v171
  %205 = vmatprep.subr.bf16.mxu0 %v174
  %206 = vmatpush1.bf16.msra.mxu0 %v173
  %207 = vmatprep.subr.bf16.mxu0 %v176
  %208 = vmatpush1.bf16.msra.mxu0 %v175
  %209 = vmatprep.subr.bf16.mxu0 %v178
  %210 = vmatpush1.bf16.msra.mxu0 %v177
  %211 = vmatprep.subr.bf16.mxu0 %v180
  %212 = vmatpush1.bf16.msra.mxu0 %v179
  %213 = vmatprep.subr.bf16.mxu0 %v182
  %214 = vmatpush1.bf16.msra.mxu0 %v181
  %215 = vmatprep.subr.bf16.mxu0 %v184
  %216 = vmatpush1.bf16.msra.mxu0 %v183
  %217 = vmatprep.subr.bf16.mxu0 0
  %218 = vmatpush1.bf16.msra.mxu0 0
  %219 = vmatprep.subr.bf16.mxu0 0
  %220 = vmatpush1.bf16.msra.mxu0 0
  %221 = vmatprep.subr.bf16.mxu0 0
  %222 = vmatpush1.bf16.msra.mxu0 0
  %223 = vmatprep.subr.bf16.mxu0 0
  %224 = vmatpush1.bf16.msra.mxu0 0
  %225 = vmatprep.subr.bf16.mxu0 0
  %226 = vmatpush1.bf16.msra.mxu0 0
  %227 = vmatprep.subr.bf16.mxu0 0
  %228 = vmatpush1.bf16.msra.mxu0 0
  %229 = vmatprep.subr.bf16.mxu0 0
  %230 = vmatpush1.bf16.msra.mxu0 0
  %231 = vmatprep.subr.bf16.mxu0 0
  %232 = vmatpush1.bf16.msra.mxu0 0
  %233 = vmatprep.mubr.bf16.mxu0 0
  %234 = vmatmul.mubr.bf16.gmra.mrb[0].mxu0 %v92
  %v235 = vpop.f32.mrb[0].mxu0
  %v236 = vadd.f32 %v114, %v235
  %v237 = vpop.f32.mrb[0].mxu0
  %v238 = vadd.f32 %v118, %v237
  %v239 = vpop.f32.mrb[0].mxu0
  %v240 = vpop.f32.mrb[0].mxu0
  %241 = vdwg.mxu0
  %v242 = vmax.f32 %v236, 0.0
  %v243 = vmax.f32 %v238, 0.0
  %v244 = vpack.c.bf16 %v242, %v242
  %v245 = vpack.c.bf16 %v243, %v243
  %v246 = vld [vmem:[%s5] sm:$0xf]
  %v247 = vld [vmem:[%s5 + $0x4] sm:$0xf]
  %v248 = vld [vmem:[%s5 + $0x8] sm:$0xf]
  %v249 = vld [vmem:[%s5 + $0xc] sm:$0xf]
  %v250 = vld [vmem:[%s5 + $0x10] sm:$0xf]
  %v251 = vld [vmem:[%s5 + $0x14] sm:$0xf]
  %v252 = vld [vmem:[%s5 + $0x18] sm:$0xf]
  %v253 = vld [vmem:[%s5 + $0x1c] sm:$0xf]
  %v254 = vld [vmem:[%s5 + $0x20] sm:$0xf]
  %v255 = vld [vmem:[%s5 + $0x24] sm:$0xf]
  %v256 = vld [vmem:[%s5 + $0x28] sm:$0xf]
  %v257 = vld [vmem:[%s5 + $0x2c] sm:$0xf]
  %v258 = vld [vmem:[%s5 + $0x30] sm:$0xf]
  %v259 = vld [vmem:[%s5 + $0x34] sm:$0xf]
  %v260 = vld [vmem:[%s5 + $0x38] sm:$0xf]
  %v261 = vld [vmem:[%s5 + $0x3c] sm:$0xf]
  %v262 = vld [vmem:[%s5 + $0x40] sm:$0xf]
  %v263 = vld [vmem:[%s5 + $0x44] sm:$0xf]
  %v264 = vld [vmem:[%s5 + $0x48] sm:$0xf]
  %v265 = vld [vmem:[%s5 + $0x4c] sm:$0xf]
  %v266 = vld [vmem:[%s5 + $0x50] sm:$0xf]
  %v267 = vld [vmem:[%s5 + $0x54] sm:$0xf]
  %v268 = vld [vmem:[%s5 + $0x58] sm:$0xf]
  %v269 = vld [vmem:[%s5 + $0x5c] sm:$0xf]
  %v270 = vld [vmem:[%s5 + $0x60] sm:$0xf]
  %v271 = vld [vmem:[%s5 + $0x64] sm:$0xf]
  %v272 = vld [vmem:[%s5 + $0x68] sm:$0xf]
  %v273 = vld [vmem:[%s5 + $0x6c] sm:$0xf]
  %v274 = vld [vmem:[%s5 + $0x70] sm:$0xf]
  %v275 = vld [vmem:[%s5 + $0x74] sm:$0xf]
  %v276 = vld [vmem:[%s5 + $0x78] sm:$0xf]
  %v277 = vld [vmem:[%s5 + $0x7c] sm:$0xf]
  %v278 = vld [vmem:[%s6] sm:$0x1]
  %v280 = vlaneseq
  %v281 = vshrl.u32 %v280, 7
  %v282 = vsub.s32 0, %v281
  %v283 = vrot.slane %v278, %v282
  %v317 = vunpack.c.l.b16 %v246
  %v318 = vunpack.c.l.b16 %v247
  %v319 = vunpack.c.l.b16 %v248
  %v320 = vunpack.c.l.b16 %v249
  %v321 = vunpack.c.l.b16 %v250
  %v322 = vunpack.c.l.b16 %v251
  %v323 = vunpack.c.l.b16 %v252
  %v324 = vunpack.c.l.b16 %v253
  %v325 = vunpack.c.l.b16 %v254
  %v326 = vunpack.c.l.b16 %v255
  %v327 = vunpack.c.l.b16 %v256
  %v328 = vunpack.c.l.b16 %v257
  %v329 = vunpack.c.l.b16 %v258
  %v330 = vunpack.c.l.b16 %v259
  %v331 = vunpack.c.l.b16 %v260
  %v332 = vunpack.c.l.b16 %v261
  %v333 = vunpack.c.l.b16 %v262
  %v334 = vunpack.c.l.b16 %v263
  %v335 = vunpack.c.l.b16 %v264
  %v336 = vunpack.c.l.b16 %v265
  %v337 = vunpack.c.l.b16 %v266
  %v338 = vunpack.c.l.b16 %v267
  %v339 = vunpack.c.l.b16 %v268
  %v340 = vunpack.c.l.b16 %v269
  %v341 = vunpack.c.l.b16 %v270
  %v342 = vunpack.c.l.b16 %v271
  %v343 = vunpack.c.l.b16 %v272
  %v344 = vunpack.c.l.b16 %v273
  %v345 = vunpack.c.l.b16 %v274
  %v346 = vunpack.c.l.b16 %v275
  %v347 = vunpack.c.l.b16 %v276
  %v348 = vunpack.c.l.b16 %v277
  %v349 = vpack.c.b16 %v318, %v317
  %v350 = vpack.c.b16 %v320, %v319
  %v351 = vpack.c.b16 %v322, %v321
  %v352 = vpack.c.b16 %v324, %v323
  %v353 = vpack.c.b16 %v326, %v325
  %v354 = vpack.c.b16 %v328, %v327
  %v355 = vpack.c.b16 %v330, %v329
  %v356 = vpack.c.b16 %v332, %v331
  %v357 = vpack.c.b16 %v334, %v333
  %v358 = vpack.c.b16 %v336, %v335
  %v359 = vpack.c.b16 %v338, %v337
  %v360 = vpack.c.b16 %v340, %v339
  %v361 = vpack.c.b16 %v342, %v341
  %v362 = vpack.c.b16 %v344, %v343
  %v363 = vpack.c.b16 %v346, %v345
  %v364 = vpack.c.b16 %v348, %v347
  %381 = vmatprep.subr.bf16.mxu0 0
  %382 = vmatpush1.bf16.msra.mxu0 %v349
  %383 = vmatprep.subr.bf16.mxu0 0
  %384 = vmatpush1.bf16.msra.mxu0 %v350
  %385 = vmatprep.subr.bf16.mxu0 0
  %386 = vmatpush1.bf16.msra.mxu0 %v351
  %387 = vmatprep.subr.bf16.mxu0 0
  %388 = vmatpush1.bf16.msra.mxu0 %v352
  %389 = vmatprep.subr.bf16.mxu0 0
  %390 = vmatpush1.bf16.msra.mxu0 %v353
  %391 = vmatprep.subr.bf16.mxu0 0
  %392 = vmatpush1.bf16.msra.mxu0 %v354
  %393 = vmatprep.subr.bf16.mxu0 0
  %394 = vmatpush1.bf16.msra.mxu0 %v355
  %395 = vmatprep.subr.bf16.mxu0 0
  %396 = vmatpush1.bf16.msra.mxu0 %v356
  %397 = vmatprep.subr.bf16.mxu0 0
  %398 = vmatpush1.bf16.msra.mxu0 %v357
  %399 = vmatprep.subr.bf16.mxu0 0
  %400 = vmatpush1.bf16.msra.mxu0 %v358
  %401 = vmatprep.subr.bf16.mxu0 0
  %402 = vmatpush1.bf16.msra.mxu0 %v359
  %403 = vmatprep.subr.bf16.mxu0 0
  %404 = vmatpush1.bf16.msra.mxu0 %v360
  %405 = vmatprep.subr.bf16.mxu0 0
  %406 = vmatpush1.bf16.msra.mxu0 %v361
  %407 = vmatprep.subr.bf16.mxu0 0
  %408 = vmatpush1.bf16.msra.mxu0 %v362
  %409 = vmatprep.subr.bf16.mxu0 0
  %410 = vmatpush1.bf16.msra.mxu0 %v363
  %411 = vmatprep.subr.bf16.mxu0 0
  %412 = vmatpush1.bf16.msra.mxu0 %v364
  %413 = vmatprep.mubr.bf16.mxu0 %v245
  %414 = vmatmul.mubr.bf16.gmra.mrb[0].mxu0 %v244
  %v415 = vpop.f32.mrb[0].mxu0
  %v416 = vadd.f32 %v283, %v415
  %v417 = vpop.f32.mrb[0].mxu0
  %v418 = vpop.f32.mrb[0].mxu0
  %v419 = vpop.f32.mrb[0].mxu0
  %420 = vdwg.mxu0
  %v421 = vmax.f32 %v416, 0.0
  %v422 = vpack.c.bf16 %v421, %v421
  %v423 = vld [vmem:[%s7] sm:$0xf]
  %v424 = vld [vmem:[%s7 + $0x4] sm:$0xf]
  %v425 = vld [vmem:[%s7 + $0x8] sm:$0xf]
  %v426 = vld [vmem:[%s7 + $0xc] sm:$0xf]
  %v427 = vld [vmem:[%s7 + $0x10] sm:$0xf]
  %v428 = vld [vmem:[%s7 + $0x14] sm:$0xf]
  %v429 = vld [vmem:[%s7 + $0x18] sm:$0xf]
  %v430 = vld [vmem:[%s7 + $0x1c] sm:$0xf]
  %v431 = vld [vmem:[%s8] sm:$0x1]
  %v433 = vlaneseq
  %v434 = vshrl.u32 %v433, 7
  %v435 = vsub.s32 0, %v434
  %v436 = vrot.slane %v431, %v435
  %v446 = vunpack.c.l.b16 %v423
  %v447 = vunpack.c.l.b16 %v424
  %v448 = vunpack.c.l.b16 %v425
  %v449 = vunpack.c.l.b16 %v426
  %v450 = vunpack.c.l.b16 %v427
  %v451 = vunpack.c.l.b16 %v428
  %v452 = vunpack.c.l.b16 %v429
  %v453 = vunpack.c.l.b16 %v430
  %v454 = vpack.c.b16 %v447, %v446
  %v455 = vpack.c.b16 %v449, %v448
  %v456 = vpack.c.b16 %v451, %v450
  %v457 = vpack.c.b16 %v453, %v452
  %vm462 = vcmask 523264
  %v464 = vsel %vm462, %v422, 0
  %466 = vmatprep.subr.bf16.mxu0 0
  %467 = vmatpush1.bf16.msra.mxu0 %v454
  %468 = vmatprep.subr.bf16.mxu0 0
  %469 = vmatpush1.bf16.msra.mxu0 %v455
  %470 = vmatprep.subr.bf16.mxu0 0
  %471 = vmatpush1.bf16.msra.mxu0 %v456
  %472 = vmatprep.subr.bf16.mxu0 0
  %473 = vmatpush1.bf16.msra.mxu0 %v457
  %474 = vmatprep.subr.bf16.mxu0 0
  %475 = vmatpush1.bf16.msra.mxu0 0
  %476 = vmatprep.subr.bf16.mxu0 0
  %477 = vmatpush1.bf16.msra.mxu0 0
  %478 = vmatprep.subr.bf16.mxu0 0
  %479 = vmatpush1.bf16.msra.mxu0 0
  %480 = vmatprep.subr.bf16.mxu0 0
  %481 = vmatpush1.bf16.msra.mxu0 0
  %482 = vmatprep.subr.bf16.mxu0 0
  %483 = vmatpush1.bf16.msra.mxu0 0
  %484 = vmatprep.subr.bf16.mxu0 0
  %485 = vmatpush1.bf16.msra.mxu0 0
  %486 = vmatprep.subr.bf16.mxu0 0
  %487 = vmatpush1.bf16.msra.mxu0 0
  %488 = vmatprep.subr.bf16.mxu0 0
  %489 = vmatpush1.bf16.msra.mxu0 0
  %490 = vmatprep.subr.bf16.mxu0 0
  %491 = vmatpush1.bf16.msra.mxu0 0
  %492 = vmatprep.subr.bf16.mxu0 0
  %493 = vmatpush1.bf16.msra.mxu0 0
  %494 = vmatprep.subr.bf16.mxu0 0
  %495 = vmatpush1.bf16.msra.mxu0 0
  %496 = vmatprep.subr.bf16.mxu0 0
  %497 = vmatpush1.bf16.msra.mxu0 0
  %498 = vmatprep.mubr.bf16.mxu0 0
  %499 = vmatmul.mubr.bf16.gmra.mrb[0].mxu0 %v464
  %v500 = vpop.f32.mrb[0].mxu0
  %v501 = vadd.f32 %v436, %v500
  %v502 = vpop.f32.mrb[0].mxu0
  %v503 = vpop.f32.mrb[0].mxu0
  %v504 = vpop.f32.mrb[0].mxu0
  %505 = vdwg.mxu0
  %506 = vst [vmem:[%s9] sm:$0xff] %v501
  // Predicated region
  $region38: #{deep_q_net_forward.1} parent=0 // pred_check
    _
  $region39: #{deep_q_net_forward.1} parent=0 // pred_check_branch
    %508 = sbr.rel (0) target = $region41
  $region40: #{deep_q_net_forward.1} parent=0 // pred_region
    _
  $region41: #{deep_q_net_forward.1} parent=0 // pred_fallthru
    _
  // Predicated region
  $region42: #{deep_q_net_forward.1} parent=0 // pred_check
    _
  $region43: #{deep_q_net_forward.1} parent=0 // pred_check_branch
    %510 = sbr.rel (0) target = $region45
  $region44: #{deep_q_net_forward.1} parent=0 // pred_region
    _
  $region45: #{deep_q_net_forward.1} parent=0 // pred_fallthru
    _

</llo_original>
